<compile_context>
chip_gen: v6e
topology: v6e:2x2x1
jax: 0.10.0
libtpu: 0.0.40
codegen_flags: <defaults>
</compile_context>

<pallas_src>
import functools

import numpy as np
import jax
import jax.numpy as jnp
from jax.experimental import pallas as pl
from jax.experimental.pallas import tpu as pltpu

_TP_TARGET = 512        # packed output rows per grid step (each row = PACK tokens)
_VCHUNK_TARGET = 256    # vocab rows streamed per grid step along the chunk axis


def _round_up(x, m):
    return ((x + m - 1) // m) * m


def _cdiv(a, b):
    return -(-a // b)


def _embedding_gather_kernel(ids_ref, w_ref, out_ref, acc_ref, *, pack, d, v_chunk):
    """ids_ref : VMEM (TP, PACK) int32   -- PACK consecutive token ids per output row
       w_ref   : VMEM (3, v_chunk, D)    -- bf16 plane chunk (w ~= w0 + w1 + w2)
       out_ref : VMEM (TP, PACK*D)       -- lane-dense packed output tile
       acc_ref : VMEM (TP, PACK*D) f32   -- accumulator, persists across the chunk axis
    """
    k = pl.program_id(1)

    @pl.when(k == 0)
    def _init():
        acc_ref[...] = jnp.zeros_like(acc_ref)

    tp = acc_ref.shape[0]
    ids = ids_ref[...]                                            # (TP, PACK) int32

    # Built once per chunk and shared across the pack loop (JAX does not CSE iota).
    iota = jax.lax.broadcasted_iota(jnp.int32, (tp, v_chunk), 1) + k * v_chunk
    w0 = w_ref[0]                                                 # (v_chunk, D) bf16
    w1 = w_ref[1]
    w2 = w_ref[2]

    for p in range(pack):                                         # static, pack <= 4
        onehot = (ids[:, p:p + 1] == iota).astype(jnp.bfloat16)   # exact in bf16
        part = (jnp.dot(onehot, w0, preferred_element_type=jnp.float32)
                + jnp.dot(onehot, w1, preferred_element_type=jnp.float32)
                + jnp.dot(onehot, w2, preferred_element_type=jnp.float32))
        acc_ref[:, p * d:(p + 1) * d] += part

    @pl.when(k == pl.num_programs(1) - 1)
    def _finish():
        out_ref[...] = acc_ref[...].astype(out_ref.dtype)


def prepare_embedding_table(weight, vchunk_target=_VCHUNK_TARGET):
    """One-time table prep (hoisted out of forward): pad the vocab axis to a whole
    number of chunks and split the f32 table into 3 exact-residual bf16 planes."""
    V, D = int(weight.shape[0]), int(weight.shape[1])
    w = weight.astype(jnp.float32)
    if V <= vchunk_target:
        v_chunk = _round_up(V, 8)
        n_chunks = 1
    else:
        v_chunk = vchunk_target
        n_chunks = _cdiv(V, v_chunk)
    v_pad = v_chunk * n_chunks
    if v_pad != V:
        w = jnp.pad(w, ((0, v_pad - V), (0, 0)))
    w0 = w.astype(jnp.bfloat16)
    r1 = w - w0.astype(jnp.float32)
    w1 = r1.astype(jnp.bfloat16)
    w2 = (r1 - w1.astype(jnp.float32)).astype(jnp.bfloat16)
    planes = jnp.stack([w0, w1, w2], axis=0)                      # (3, v_pad, D) bf16
    return planes, v_chunk, n_chunks


def embedding_lookup_pallas(flat_ids, planes, v_chunk, n_chunks, embedding_dim,
                            out_dtype):
    """flat_ids: (T,) int32. planes: (3, V_pad, D) bf16. Returns (T, D) gathered rows."""
    T = int(flat_ids.shape[0])
    D = int(embedding_dim)

    # Lane-dense packing: PACK consecutive tokens per output row so the output tile's
    # last dim is a multiple of 128 whenever possible.
    pack = 128 // D if (D < 128 and 128 % D == 0) else 1

    q = _cdiv(max(T, 1), pack)                      # packed rows needed
    # Keep >= 2 grid steps along the token axis when possible (v7x has 2 TCs).
    if q > 8:
        tp = min(_TP_TARGET, _round_up(_cdiv(q, 2), 8))
    else:
        tp = _round_up(q, 8)
    q_pad = _round_up(q, tp)
    t_pad = q_pad * pack

    ids = flat_ids.astype(jnp.int32)
    if t_pad != T:
        # Pad with -1: matches no vocab row -> zero output rows for the tail.
        ids = jnp.concatenate([ids, jnp.full((t_pad - T,), -1, jnp.int32)], axis=0)
    ids2d = ids.reshape(q_pad, pack)                 # free row-major reshape

    grid = (q_pad // tp, n_chunks)
    kernel = functools.partial(_embedding_gather_kernel, pack=pack, d=D,
                               v_chunk=v_chunk)

    cp_kwargs = dict(dimension_semantics=("parallel", "arbitrary"))
    est_bytes = (2 * tp * pack * 4                    # ids tiles (double-buffered)
                 + 2 * tp * pack * D * 4              # output tiles
                 + 2 * 3 * v_chunk * D * 2            # weight-chunk tiles (bf16)
                 + tp * pack * D * 4                  # f32 accumulator scratch
                 + 2 * tp * v_chunk * (4 + 2))        # iota + one-hot intermediates
    if est_bytes > 12 * 1024 * 1024:
        try:
            cap = int(pltpu.get_tpu_info().vmem_capacity_bytes * 0.85)
        except Exception:  # pragma: no cover - info query unavailable
            cap = 48 * 1024 * 1024
        cp_kwargs["vmem_limit_bytes"] = int(
            min(max(est_bytes * 3 // 2, 16 * 1024 * 1024), cap))

    out_packed = pl.pallas_call(
        kernel,
        out_shape=jax.ShapeDtypeStruct((q_pad, pack * D), out_dtype),
        grid=grid,
        in_specs=[
            pl.BlockSpec((tp, pack), lambda i, k: (i, 0)),          # ids tile
            pl.BlockSpec((3, v_chunk, D), lambda i, k: (0, k, 0)),  # weight chunk
        ],
        out_specs=pl.BlockSpec((tp, pack * D), lambda i, k: (i, 0)),
        scratch_shapes=[pltpu.VMEM((tp, pack * D), jnp.float32)],
        compiler_params=pltpu.CompilerParams(**cp_kwargs),
    )(ids2d, planes)

    # (q_pad, PACK*D) -> (t_pad, D) is a pure row-major reshape (no data movement).
    return out_packed.reshape(t_pad, D)[:T]


class EmbeddingPallas:
    """JAX/Pallas equivalent of neuronlp2.nn.modules.sparse.Embedding (forward)."""

    def __init__(self, num_embeddings, embedding_dim, padding_idx=None,
                 key=jax.random.PRNGKey(0)):
        self.num_embeddings = num_embeddings
        self.embedding_dim = embedding_dim
        self.padding_idx = padding_idx
        # reset_parameters: uniform(-scale, scale), scale = sqrt(3 / embedding_dim)
        scale = float(np.sqrt(3.0 / embedding_dim))
        w = jax.random.uniform(key, (num_embeddings, embedding_dim),
                               dtype=jnp.float32, minval=-scale, maxval=scale)
        if padding_idx is not None:
            w = w.at[padding_idx].set(0.0)
        self.weight = w
        # Table prep (pad + bf16 plane split) done once, outside the forward path.
        self._planes, self._v_chunk, self._n_chunks = prepare_embedding_table(w)

    def __call__(self, ids):
        # ids: integer array (N1, ..., Nm, W) -> output (N1, ..., Nm, W, embedding_dim)
        ids = jnp.asarray(ids, dtype=jnp.int32)
        input_shape = ids.shape
        flat = ids.reshape(-1)
        gathered = embedding_lookup_pallas(flat, self._planes, self._v_chunk,
                                           self._n_chunks, self.embedding_dim,
                                           self.weight.dtype)
        return gathered.reshape(input_shape + (self.embedding_dim,))


if __name__ == "__main__":
    key = jax.random.PRNGKey(0)
    k_w, k_ids, k_ids2 = jax.random.split(key, 3)

    num_embeddings = 64
    embedding_dim = 32
    padding_idx = 0

    emb = EmbeddingPallas(num_embeddings, embedding_dim,
                          padding_idx=padding_idx, key=k_w)

    # Test 1: module-spec shape (N1, N2, W) = (2, 3, 8) -> (2, 3, 8, 32)
    ids = jax.random.randint(k_ids, (2, 3, 8), minval=0,
                             maxval=num_embeddings, dtype=jnp.int32)
    out = jax.block_until_ready(emb(ids))
    ref = jnp.take(emb.weight, ids.reshape(-1), axis=0).reshape(
        ids.shape + (embedding_dim,))
    assert out.shape == (2, 3, 8, embedding_dim), out.shape
    np.testing.assert_allclose(np.asarray(out), np.asarray(ref),
                               rtol=1e-6, atol=1e-6)

    # Test 2: exercises multi-step grid + tail padding: (2, 1100).
    ids2 = jax.random.randint(k_ids2, (2, 1100), minval=0,
                              maxval=num_embeddings, dtype=jnp.int32)
    out2 = jax.block_until_ready(emb(ids2))
    ref2 = jnp.take(emb.weight, ids2.reshape(-1), axis=0).reshape(
        ids2.shape + (embedding_dim,))
    np.testing.assert_allclose(np.asarray(out2), np.asarray(ref2),
                               rtol=1e-6, atol=1e-6)

    print("KERNEL_OK")
</pallas_src>

<mosaic_0001>
module attributes {stable_mosaic.version = 11 : i64} {
  func.func @_embedding_gather_kernel(%arg0: i32, %arg1: i32, %arg2: memref<8x4xi32, #tpu.memory_space<vmem>>, %arg3: memref<3x64x32xbf16, #tpu.memory_space<vmem>>, %arg4: memref<8x128xf32, #tpu.memory_space<vmem>>, %arg5: memref<8x128xf32, #tpu.memory_space<vmem>>) attributes {dimension_semantics = [#tpu.dimension_semantics<parallel>, #tpu.dimension_semantics<arbitrary>], iteration_bounds = array<i64: 2, 1>, scalar_prefetch = 0 : i64, scratch_operands = 1 : i64, tpu.core_type = #tpu.core_type<tc>, window_params = [{transform_indices = @transform_0, window_bounds = array<i64: 8, 4>}, {transform_indices = @transform_1, window_bounds = array<i64: 3, 64, 32>}, {transform_indices = @transform_2, window_bounds = array<i64: 8, 128>}]} {
    %c0_i32 = arith.constant 0 : i32
    %0 = arith.cmpi eq, %arg1, %c0_i32 : i32
    %1 = arith.extui %0 : i1 to i32
    %c0_i32_0 = arith.constant 0 : i32
    %2 = arith.cmpi ne, %1, %c0_i32_0 : i32
    scf.if %2 {
      %cst_35 = arith.constant 0.000000e+00 : f32
      %73 = vector.broadcast %cst_35 : f32 to vector<8x128xf32>
      %c0_36 = arith.constant 0 : index
      %c0_37 = arith.constant 0 : index
      %74 = vector.load %arg5[%c0_36, %c0_37] : memref<8x128xf32, #tpu.memory_space<vmem>>, vector<8x128xf32>
      tpu.vector_store %arg5[%c0_36, %c0_37], %73 {strides = array<i32>} : memref<8x128xf32, #tpu.memory_space<vmem>>, vector<8x128xf32>,
    } else {
    }
    %c0 = arith.constant 0 : index
    %c0_1 = arith.constant 0 : index
    %3 = vector.load %arg2[%c0, %c0_1] : memref<8x4xi32, #tpu.memory_space<vmem>>, vector<8x4xi32>
    %4 = tpu.iota {dimensions = array<i32: 1>} : vector<8x64xi32>
    %c64_i32 = arith.constant 64 : i32
    %5 = arith.muli %arg1, %c64_i32 : i32
    %6 = vector.broadcast %5 : i32 to vector<8x64xi32>
    %7 = arith.addi %4, %6 : vector<8x64xi32>
    %c0_2 = arith.constant 0 : index
    %c0_3 = arith.constant 0 : index
    %c0_4 = arith.constant 0 : index
    %8 = vector.load %arg3[%c0_2, %c0_3, %c0_4] : memref<3x64x32xbf16, #tpu.memory_space<vmem>>, vector<1x64x32xbf16>
    %9 = vector.shape_cast %8 : vector<1x64x32xbf16> to vector<64x32xbf16>
    %c1 = arith.constant 1 : index
    %c0_5 = arith.constant 0 : index
    %c0_6 = arith.constant 0 : index
    %10 = vector.load %arg3[%c1, %c0_5, %c0_6] : memref<3x64x32xbf16, #tpu.memory_space<vmem>>, vector<1x64x32xbf16>
    %11 = vector.shape_cast %10 : vector<1x64x32xbf16> to vector<64x32xbf16>
    %c2 = arith.constant 2 : index
    %c0_7 = arith.constant 0 : index
    %c0_8 = arith.constant 0 : index
    %12 = vector.load %arg3[%c2, %c0_7, %c0_8] : memref<3x64x32xbf16, #tpu.memory_space<vmem>>, vector<1x64x32xbf16>
    %13 = vector.shape_cast %12 : vector<1x64x32xbf16> to vector<64x32xbf16>
    %14 = vector.extract_strided_slice %3 {offsets = [0, 0], sizes = [8, 1], strides = [1, 1]} : vector<8x4xi32> to vector<8x1xi32>
    %15 = vector.broadcast %14 : vector<8x1xi32> to vector<8x64xi32>
    %16 = arith.cmpi eq, %15, %7 : vector<8x64xi32>
    %17 = arith.extui %16 : vector<8x64xi1> to vector<8x64xi32>
    %18 = arith.sitofp %17 : vector<8x64xi32> to vector<8x64xf32>
    %19 = arith.truncf %18 : vector<8x64xf32> to vector<8x64xbf16>
    %cst = arith.constant dense<0.000000e+00> : vector<8x32xf32>
    %20 = tpu.matmul %19, %9, %cst {dimension_numbers = #tpu.dot_dimension_numbers<[1], [0], [0], [1], [0, 0, 1, 1], [], []>} : vector<8x64xbf16>, vector<64x32xbf16>, vector<8x32xf32> -> vector<8x32xf32>
    %cst_9 = arith.constant dense<0.000000e+00> : vector<8x32xf32>
    %21 = tpu.matmul %19, %11, %cst_9 {dimension_numbers = #tpu.dot_dimension_numbers<[1], [0], [0], [1], [0, 0, 1, 1], [], []>} : vector<8x64xbf16>, vector<64x32xbf16>, vector<8x32xf32> -> vector<8x32xf32>
    %22 = arith.addf %20, %21 : vector<8x32xf32>
    %cst_10 = arith.constant dense<0.000000e+00> : vector<8x32xf32>
    %23 = tpu.matmul %19, %13, %cst_10 {dimension_numbers = #tpu.dot_dimension_numbers<[1], [0], [0], [1], [0, 0, 1, 1], [], []>} : vector<8x64xbf16>, vector<64x32xbf16>, vector<8x32xf32> -> vector<8x32xf32>
    %24 = arith.addf %22, %23 : vector<8x32xf32>
    %c0_11 = arith.constant 0 : index
    %c0_12 = arith.constant 0 : index
    %25 = vector.load %arg5[%c0_11, %c0_12] : memref<8x128xf32, #tpu.memory_space<vmem>>, vector<8x32xf32>
    %26 = arith.addf %25, %24 : vector<8x32xf32>
    %c0_13 = arith.constant 0 : index
    %c0_14 = arith.constant 0 : index
    %27 = vector.load %arg5[%c0_13, %c0_14] : memref<8x128xf32, #tpu.memory_space<vmem>>, vector<8x32xf32>
    tpu.vector_store %arg5[%c0_13, %c0_14], %26 {strides = array<i32>} : memref<8x128xf32, #tpu.memory_space<vmem>>, vector<8x32xf32>,
    %28 = vector.extract_strided_slice %3 {offsets = [0, 1], sizes = [8, 1], strides = [1, 1]} : vector<8x4xi32> to vector<8x1xi32>
    %29 = vector.broadcast %28 : vector<8x1xi32> to vector<8x64xi32>
    %30 = arith.cmpi eq, %29, %7 : vector<8x64xi32>
    %31 = arith.extui %30 : vector<8x64xi1> to vector<8x64xi32>
    %32 = arith.sitofp %31 : vector<8x64xi32> to vector<8x64xf32>
    %33 = arith.truncf %32 : vector<8x64xf32> to vector<8x64xbf16>
    %cst_15 = arith.constant dense<0.000000e+00> : vector<8x32xf32>
    %34 = tpu.matmul %33, %9, %cst_15 {dimension_numbers = #tpu.dot_dimension_numbers<[1], [0], [0], [1], [0, 0, 1, 1], [], []>} : vector<8x64xbf16>, vector<64x32xbf16>, vector<8x32xf32> -> vector<8x32xf32>
    %cst_16 = arith.constant dense<0.000000e+00> : vector<8x32xf32>
    %35 = tpu.matmul %33, %11, %cst_16 {dimension_numbers = #tpu.dot_dimension_numbers<[1], [0], [0], [1], [0, 0, 1, 1], [], []>} : vector<8x64xbf16>, vector<64x32xbf16>, vector<8x32xf32> -> vector<8x32xf32>
    %36 = arith.addf %34, %35 : vector<8x32xf32>
    %cst_17 = arith.constant dense<0.000000e+00> : vector<8x32xf32>
    %37 = tpu.matmul %33, %13, %cst_17 {dimension_numbers = #tpu.dot_dimension_numbers<[1], [0], [0], [1], [0, 0, 1, 1], [], []>} : vector<8x64xbf16>, vector<64x32xbf16>, vector<8x32xf32> -> vector<8x32xf32>
    %38 = arith.addf %36, %37 : vector<8x32xf32>
    %c0_18 = arith.constant 0 : index
    %c32 = arith.constant 32 : index
    %39 = vector.load %arg5[%c0_18, %c32] : memref<8x128xf32, #tpu.memory_space<vmem>>, vector<8x32xf32>
    %40 = arith.addf %39, %38 : vector<8x32xf32>
    %c0_19 = arith.constant 0 : index
    %c32_20 = arith.constant 32 : index
    %41 = vector.load %arg5[%c0_19, %c32_20] : memref<8x128xf32, #tpu.memory_space<vmem>>, vector<8x32xf32>
    tpu.vector_store %arg5[%c0_19, %c32_20], %40 {strides = array<i32>} : memref<8x128xf32, #tpu.memory_space<vmem>>, vector<8x32xf32>,
    %42 = vector.extract_strided_slice %3 {offsets = [0, 2], sizes = [8, 1], strides = [1, 1]} : vector<8x4xi32> to vector<8x1xi32>
    %43 = vector.broadcast %42 : vector<8x1xi32> to vector<8x64xi32>
    %44 = arith.cmpi eq, %43, %7 : vector<8x64xi32>
    %45 = arith.extui %44 : vector<8x64xi1> to vector<8x64xi32>
    %46 = arith.sitofp %45 : vector<8x64xi32> to vector<8x64xf32>
    %47 = arith.truncf %46 : vector<8x64xf32> to vector<8x64xbf16>
    %cst_21 = arith.constant dense<0.000000e+00> : vector<8x32xf32>
    %48 = tpu.matmul %47, %9, %cst_21 {dimension_numbers = #tpu.dot_dimension_numbers<[1], [0], [0], [1], [0, 0, 1, 1], [], []>} : vector<8x64xbf16>, vector<64x32xbf16>, vector<8x32xf32> -> vector<8x32xf32>
    %cst_22 = arith.constant dense<0.000000e+00> : vector<8x32xf32>
    %49 = tpu.matmul %47, %11, %cst_22 {dimension_numbers = #tpu.dot_dimension_numbers<[1], [0], [0], [1], [0, 0, 1, 1], [], []>} : vector<8x64xbf16>, vector<64x32xbf16>, vector<8x32xf32> -> vector<8x32xf32>
    %50 = arith.addf %48, %49 : vector<8x32xf32>
    %cst_23 = arith.constant dense<0.000000e+00> : vector<8x32xf32>
    %51 = tpu.matmul %47, %13, %cst_23 {dimension_numbers = #tpu.dot_dimension_numbers<[1], [0], [0], [1], [0, 0, 1, 1], [], []>} : vector<8x64xbf16>, vector<64x32xbf16>, vector<8x32xf32> -> vector<8x32xf32>
    %52 = arith.addf %50, %51 : vector<8x32xf32>
    %c0_24 = arith.constant 0 : index
    %c64 = arith.constant 64 : index
    %53 = vector.load %arg5[%c0_24, %c64] : memref<8x128xf32, #tpu.memory_space<vmem>>, vector<8x32xf32>
    %54 = arith.addf %53, %52 : vector<8x32xf32>
    %c0_25 = arith.constant 0 : index
    %c64_26 = arith.constant 64 : index
    %55 = vector.load %arg5[%c0_25, %c64_26] : memref<8x128xf32, #tpu.memory_space<vmem>>, vector<8x32xf32>
    tpu.vector_store %arg5[%c0_25, %c64_26], %54 {strides = array<i32>} : memref<8x128xf32, #tpu.memory_space<vmem>>, vector<8x32xf32>,
    %56 = vector.extract_strided_slice %3 {offsets = [0, 3], sizes = [8, 1], strides = [1, 1]} : vector<8x4xi32> to vector<8x1xi32>
    %57 = vector.broadcast %56 : vector<8x1xi32> to vector<8x64xi32>
    %58 = arith.cmpi eq, %57, %7 : vector<8x64xi32>
    %59 = arith.extui %58 : vector<8x64xi1> to vector<8x64xi32>
    %60 = arith.sitofp %59 : vector<8x64xi32> to vector<8x64xf32>
    %61 = arith.truncf %60 : vector<8x64xf32> to vector<8x64xbf16>
    %cst_27 = arith.constant dense<0.000000e+00> : vector<8x32xf32>
    %62 = tpu.matmul %61, %9, %cst_27 {dimension_numbers = #tpu.dot_dimension_numbers<[1], [0], [0], [1], [0, 0, 1, 1], [], []>} : vector<8x64xbf16>, vector<64x32xbf16>, vector<8x32xf32> -> vector<8x32xf32>
    %cst_28 = arith.constant dense<0.000000e+00> : vector<8x32xf32>
    %63 = tpu.matmul %61, %11, %cst_28 {dimension_numbers = #tpu.dot_dimension_numbers<[1], [0], [0], [1], [0, 0, 1, 1], [], []>} : vector<8x64xbf16>, vector<64x32xbf16>, vector<8x32xf32> -> vector<8x32xf32>
    %64 = arith.addf %62, %63 : vector<8x32xf32>
    %cst_29 = arith.constant dense<0.000000e+00> : vector<8x32xf32>
    %65 = tpu.matmul %61, %13, %cst_29 {dimension_numbers = #tpu.dot_dimension_numbers<[1], [0], [0], [1], [0, 0, 1, 1], [], []>} : vector<8x64xbf16>, vector<64x32xbf16>, vector<8x32xf32> -> vector<8x32xf32>
    %66 = arith.addf %64, %65 : vector<8x32xf32>
    %c0_30 = arith.constant 0 : index
    %c96 = arith.constant 96 : index
    %67 = vector.load %arg5[%c0_30, %c96] : memref<8x128xf32, #tpu.memory_space<vmem>>, vector<8x32xf32>
    %68 = arith.addf %67, %66 : vector<8x32xf32>
    %c0_31 = arith.constant 0 : index
    %c96_32 = arith.constant 96 : index
    %69 = vector.load %arg5[%c0_31, %c96_32] : memref<8x128xf32, #tpu.memory_space<vmem>>, vector<8x32xf32>
    tpu.vector_store %arg5[%c0_31, %c96_32], %68 {strides = array<i32>} : memref<8x128xf32, #tpu.memory_space<vmem>>, vector<8x32xf32>,
    %c0_i32_33 = arith.constant 0 : i32
    %70 = arith.cmpi eq, %arg1, %c0_i32_33 : i32
    %71 = arith.extui %70 : i1 to i32
    %c0_i32_34 = arith.constant 0 : i32
    %72 = arith.cmpi ne, %71, %c0_i32_34 : i32
    scf.if %72 {
      %c0_35 = arith.constant 0 : index
      %c0_36 = arith.constant 0 : index
      %73 = vector.load %arg5[%c0_35, %c0_36] : memref<8x128xf32, #tpu.memory_space<vmem>>, vector<8x128xf32>
      %c0_37 = arith.constant 0 : index
      %c0_38 = arith.constant 0 : index
      %74 = vector.load %arg4[%c0_37, %c0_38] : memref<8x128xf32, #tpu.memory_space<vmem>>, vector<8x128xf32>
      tpu.vector_store %arg4[%c0_37, %c0_38], %73 {strides = array<i32>} : memref<8x128xf32, #tpu.memory_space<vmem>>, vector<8x128xf32>,
    } else {
    }
    return
  }
  func.func @transform_0(%arg0: i32, %arg1: i32) -> (i32, i32) {
    %c0_i32 = arith.constant 0 : i32
    %c0_i32_0 = arith.constant 0 : i32
    return %arg0, %c0_i32 : i32, i32
  }
  func.func @transform_1(%arg0: i32, %arg1: i32) -> (i32, i32, i32) {
    %c0_i32 = arith.constant 0 : i32
    %c0_i32_0 = arith.constant 0 : i32
    %c0_i32_1 = arith.constant 0 : i32
    return %c0_i32, %arg1, %c0_i32_0 : i32, i32, i32
  }
  func.func @transform_2(%arg0: i32, %arg1: i32) -> (i32, i32) {
    %c0_i32 = arith.constant 0 : i32
    %c0_i32_0 = arith.constant 0 : i32
    return %arg0, %c0_i32 : i32, i32
  }
}

</mosaic_0001>

<llo_original>
// kernel: tpu_custom_call.1
$region0: #{tpu_custom_call.1}
  #allocation0 [shape = 'u32[]', space=smem, size = 0x4, offset = 0x4, fixed_abs, tag = 'smem constant byte address 0x4 - core index']
  #allocation1 [shape = 'u32[144,128]{1,0:T(1,128)}', space=vmem, size = 0x12000, scoped, tag = 'internal scratch']
  #allocation2 [shape = 'f32[8,128]{1,0:T(8,128)}', space=vmem, size = 0x1000, scoped, tag = 'scratch operand']
  %s0 = inlined_call_operand.vmem [shape: s32[16,4], index: 0, kind: input, shape index: {}]
  %s1 = inlined_call_operand.vmem [shape: bf16[3,64,32], index: 1, kind: input, shape index: {}]
  %s2 = inlined_call_operand.hbm [shape: f32[16,128], index: 2, kind: output, shape index: {}]
  %s3 = sld [smem:[#allocation0]]
  $region49: #{tpu_custom_call.1} parent=0
    _
  %s5 = ssub.s32 1, %s3
  %s6 = scalar_select 0, %s5, %s3
  $region1: #{tpu_custom_call.1} parent=0
    #allocation3 [shape = 'u8[8192]{0}', space=vmem, size = 0x2000, scoped, tag = 'output window, operand 0']
    #allocation4 [shape = 's32[2]{0}', space=sflag, size = 0x8, scoped, tag = 'scoped memory for tpu_custom_call.1']
    %7 = vsyncpa [#allocation4], 0
    %s8 = scalar_lea.sflag [#allocation4], 1
    %9 = vsyncpa %s8, 0
    loop: start=0, step=1, limit=4
    $region2: #{tpu_custom_call.1} parent=1 // loop_pre_header
      _
    $region3: #{tpu_custom_call.1} parent=1 // loop_header
      %s11 = sphi 0, %s15
      %p12 = scmp.ge.s32.totalorder %s11, 4
      %s18 = sphi 0, %s30
      %s19 = sphi 0, %s26
      %s20 = sphi 0, %s18
      %s21 = sphi 0, %s19
      %s22 = sphi 0, %s20
      %s23 = sphi 0, %s21
      %s33 = sphi 0, %s35
      %s36 = sphi 0, %s33
      %s37 = sphi 0, %s36
      %s53 = sphi 0, %s37
      %s59 = sphi 0, %s61
      %s62 = sphi 0, %s59
      %s63 = sphi 0, %s62
      %s79 = sphi 0, %s63
      %s85 = sphi 0, %s87
      %s88 = sphi 0, %s85
      %s89 = sphi 0, %s88
      %s105 = sphi 0, %s89
    $region4: #{tpu_custom_call.1} parent=1 // loop_header_branch
      %14 = sbr.rel (%p12) target = $region8
    $region5: #{tpu_custom_call.1} parent=1 // loop_body
      %s16 = ssub.s32 %s11, 1
      %s17 = ssub.s32 %s11, 2
      %s24 = sadd.s32 1, %s19
      %p25 = scmp.ge.s32.totalorder %s24, 1
      %s26 = scalar_select %p25, 0, %s24
      %s27 = sadd.s32 1, %s18
      %s28 = scalar_select %p25, %s27, %s18
      %p29 = scmp.ge.s32.totalorder %s28, 2
      %s30 = scalar_select %p29, 0, %s28
      %s31 = ssub.s32 %s18, %s30
      %p32 = scmp.eq.s32.totalorder %s31, 0
      %s34 = sadd.s32 %s33, 1
      %s35 = scalar_select %p32, %s33, %s34
      %p38 = pneg %p32
      %p39 = scmp.eq.s32.totalorder %s11, 1
      %p40 = por %p38, %p39
      %p41 = scmp.ne.s32.totalorder %s33, %s36
      %p42 = scmp.eq.s32.totalorder %s11, 0
      %p43 = por %p41, %p42
      %p44 = scmp.ne.s32.totalorder %s33, %s36
      %p45 = scmp.eq.s32.totalorder %s16, 1
      %p46 = por %p44, %p45
      %p47 = scmp.ne.s32.totalorder %s36, %s37
      %p48 = scmp.eq.s32.totalorder %s16, 0
      %p49 = por %p47, %p48
      %p50 = scmp.ne.s32.totalorder %s36, %s37
      %p51 = scmp.eq.s32.totalorder %s17, 1
      %p52 = por %p50, %p51
      %p54 = scmp.ne.s32.totalorder %s37, %s53
      %p55 = scmp.eq.s32.totalorder %s17, 0
      %p56 = por %p54, %p55
      %s57 = ssub.s32 %s19, %s26
      %p58 = scmp.eq.s32.totalorder %s57, 0
      %s60 = sadd.s32 %s59, 1
      %s61 = scalar_select %p58, %s59, %s60
      %p64 = pneg %p58
      %p65 = scmp.eq.s32.totalorder %s11, 1
      %p66 = por %p64, %p65
      %p67 = scmp.ne.s32.totalorder %s59, %s62
      %p68 = scmp.eq.s32.totalorder %s11, 0
      %p69 = por %p67, %p68
      %p70 = scmp.ne.s32.totalorder %s59, %s62
      %p71 = scmp.eq.s32.totalorder %s16, 1
      %p72 = por %p70, %p71
      %p73 = scmp.ne.s32.totalorder %s62, %s63
      %p74 = scmp.eq.s32.totalorder %s16, 0
      %p75 = por %p73, %p74
      %p76 = scmp.ne.s32.totalorder %s62, %s63
      %p77 = scmp.eq.s32.totalorder %s17, 1
      %p78 = por %p76, %p77
      %p80 = scmp.ne.s32.totalorder %s63, %s79
      %p81 = scmp.eq.s32.totalorder %s17, 0
      %p82 = por %p80, %p81
      %s83 = ssub.s32 %s18, %s30
      %p84 = scmp.eq.s32.totalorder %s83, 0
      %s86 = sadd.s32 %s85, 1
      %s87 = scalar_select %p84, %s85, %s86
      %p90 = pneg %p84
      %p91 = scmp.eq.s32.totalorder %s11, 1
      %p92 = por %p90, %p91
      %p93 = scmp.ne.s32.totalorder %s85, %s88
      %p94 = scmp.eq.s32.totalorder %s11, 0
      %p95 = por %p93, %p94
      %p96 = scmp.ne.s32.totalorder %s85, %s88
      %p97 = scmp.eq.s32.totalorder %s16, 1
      %p98 = por %p96, %p97
      %p99 = scmp.ne.s32.totalorder %s88, %s89
      %p100 = scmp.eq.s32.totalorder %s16, 0
      %p101 = por %p99, %p100
      %p102 = scmp.ne.s32.totalorder %s88, %s89
      %p103 = scmp.eq.s32.totalorder %s17, 1
      %p104 = por %p102, %p103
      %p106 = scmp.ne.s32.totalorder %s89, %s105
      %p107 = scmp.eq.s32.totalorder %s17, 0
      %p108 = por %p106, %p107
      %p109 = scmp.le.s32.totalorder 1, %s11
      %p110 = scmp.lt.s32.totalorder %s11, 3
      %p111 = pnand %p109, %p110
      %p112 = pneg %p111
      // Predicated region
      $region9: #{tpu_custom_call.1} parent=5 // pred_check
        _
      $region10: #{tpu_custom_call.1} parent=5 // pred_check_branch
        %114 = sbr.rel (%p111) target = $region12
      $region11: #{tpu_custom_call.1} parent=5 // pred_region
        %s115 = ssub.s32 %s11, 1
        // Predicated region
        $region13: #{tpu_custom_call.1} parent=11 // pred_check
          %p116 = pneg %p75
        $region14: #{tpu_custom_call.1} parent=11 // pred_check_branch
          %118 = sbr.rel (%p116) target = $region16
        $region15: #{tpu_custom_call.1} parent=11 // pred_region
          %s119 = smul.u32 8, %s21
          %p120 = scmp.lt.s32.totalorder %s119, 7
          %s121 = scalar_select %p120, %s119, 7
          %s122 = smul.addr %s121, 4
          %s123 = scalar_lea.vmem %s1, %s122
          %s124 = smul.u32 8, %s21
        $region16: #{tpu_custom_call.1} parent=11 // pred_fallthru
          _
      $region12: #{tpu_custom_call.1} parent=5 // pred_fallthru
        _
      %p125 = scmp.lt.s32.totalorder %s11, 2
      // Predicated region
      $region17: #{tpu_custom_call.1} parent=5 // pred_check
        %p126 = pneg %p125
      $region18: #{tpu_custom_call.1} parent=5 // pred_check_branch
        %128 = sbr.rel (%p126) target = $region20
      $region19: #{tpu_custom_call.1} parent=5 // pred_region
        // Predicated region
        $region21: #{tpu_custom_call.1} parent=19 // pred_check
          %p129 = pneg %p43
        $region22: #{tpu_custom_call.1} parent=19 // pred_check_branch
          %131 = sbr.rel (%p129) target = $region24
        $region23: #{tpu_custom_call.1} parent=19 // pred_region
          %p132 = scmp.lt.s32.totalorder %s18, 1
          %s133 = scalar_select %p132, %s18, 1
          %s134 = smul.addr %s133, 8
          %s135 = scalar_lea.vmem %s0, %s134
        $region24: #{tpu_custom_call.1} parent=19 // pred_fallthru
          _
      $region20: #{tpu_custom_call.1} parent=5 // pred_fallthru
        _
      %p136 = scmp.le.s32.totalorder 1, %s11
      %p137 = scmp.lt.s32.totalorder %s11, 3
      %p138 = pnand %p136, %p137
      %p139 = pneg %p138
      // Predicated region
      $region25: #{tpu_custom_call.1} parent=5 // pred_check
        _
      $region26: #{tpu_custom_call.1} parent=5 // pred_check_branch
        %141 = sbr.rel (%p138) target = $region28
      $region27: #{tpu_custom_call.1} parent=5 // pred_region
        %s142 = ssub.s32 %s11, 1
        %p143 = scmp.lt.s32.totalorder %s20, 1
        %s144 = scalar_select %p143, %s20, 1
        %s145 = smul.addr %s144, 8
        %s146 = scalar_lea.vmem %s0, %s145
        %p147 = pneg %p49
        %p148 = pneg %p46
        %s149 = smul.u32 8, %s21
        %p150 = scmp.lt.s32.totalorder %s149, 7
        %s151 = scalar_select %p150, %s149, 7
        %s152 = smul.addr %s151, 4
        %s153 = scalar_lea.vmem %s1, %s152
        %p154 = pneg %p75
        %p155 = pneg %p72
        %p156 = pneg %p101
        %p157 = pneg %p98
        %s158 = sand.u32 %s88, 1
        %s159 = scalar_lea.sflag [#allocation4], %s158
        %s160 = sand.u32 %s88, 1
        %s161 = smul.addr %s160, 8
        %s162 = scalar_lea.vmem [#allocation3], %s161
        %p163 = scmp.lt.s32.totalorder %s20, 1
        %s164 = scalar_select %p163, %s20, 1
        %s165 = smul.addr %s164, 8
        %s166 = scalar_lea.vmem %s0, %s165
        %s167 = smul.u32 8, %s21
        %p168 = scmp.lt.s32.totalorder %s167, 7
        %s169 = scalar_select %p168, %s167, 7
        %s170 = smul.addr %s169, 4
        %s171 = scalar_lea.vmem %s1, %s170
        %s172 = smul.u32 8, %s21
        %p174 = scmp.eq.s32.totalorder %s21, 0
        // Predicated region
        $region29: #{tpu_custom_call.1} parent=27 // pred_check
          %p175 = pneg %p174
        $region30: #{tpu_custom_call.1} parent=27 // pred_check_branch
          %177 = sbr.rel (%p175) target = $region32
        $region31: #{tpu_custom_call.1} parent=27 // pred_region
          %178 = vst [vmem:[#allocation2] sm:$0xff] 0.0
        $region32: #{tpu_custom_call.1} parent=27 // pred_fallthru
          _
        %v179 = vld [vmem:[%s166] sm:$0xff]
        %v180 = vlaneseq
        %v181 = vand.u32 %v180, 127
        %s182 = smul.u32 %s21, 64
        %v183 = vstv %s182
        %v184 = vadd.s32 %v181, %v183
        %v185 = vld [vmem:[%s171] sm:$0xf]
        %v186 = vld [vmem:[%s171 + $0x4] sm:$0xf]
        %v187 = vld [vmem:[%s171 + $0x8] sm:$0xf]
        %v188 = vld [vmem:[%s171 + $0xc] sm:$0xf]
        %v189 = vld [vmem:[%s171 + $0x10] sm:$0xf]
        %v190 = vld [vmem:[%s171 + $0x14] sm:$0xf]
        %v191 = vld [vmem:[%s171 + $0x18] sm:$0xf]
        %v192 = vld [vmem:[%s171 + $0x1c] sm:$0xf]
        %s193 = scalar_lea.vmem %s171, 32
        %v194 = vld [vmem:[%s193] sm:$0xf]
        %v195 = vld [vmem:[%s193 + $0x4] sm:$0xf]
        %v196 = vld [vmem:[%s193 + $0x8] sm:$0xf]
        %v197 = vld [vmem:[%s193 + $0xc] sm:$0xf]
        %v198 = vld [vmem:[%s193 + $0x10] sm:$0xf]
        %v199 = vld [vmem:[%s193 + $0x14] sm:$0xf]
        %v200 = vld [vmem:[%s193 + $0x18] sm:$0xf]
        %v201 = vld [vmem:[%s193 + $0x1c] sm:$0xf]
        %s202 = scalar_lea.vmem %s171, 64
        %v203 = vld [vmem:[%s202] sm:$0xf]
        %v204 = vld [vmem:[%s202 + $0x4] sm:$0xf]
        %v205 = vld [vmem:[%s202 + $0x8] sm:$0xf]
        %v206 = vld [vmem:[%s202 + $0xc] sm:$0xf]
        %v207 = vld [vmem:[%s202 + $0x10] sm:$0xf]
        %v208 = vld [vmem:[%s202 + $0x14] sm:$0xf]
        %v209 = vld [vmem:[%s202 + $0x18] sm:$0xf]
        %v210 = vld [vmem:[%s202 + $0x1c] sm:$0xf]
        %211 = vset.pattern.permute.xlu0 0
        %212 = vperm.xlu0 %211, %v179
        %v213 = vpop.permute.xlu0 %212
        %vm214 = vcmp.eq.s32.totalorder %v213, %v184
        %v215 = vsel %vm214, 1, 0
        %v216 = vcvt.s32.f32 %v215
        %v217 = vpack.c.bf16 %v216, %v216
        %v226 = vunpack.c.l.b16 %v194
        %v227 = vunpack.c.l.b16 %v195
        %v228 = vunpack.c.l.b16 %v196
        %v229 = vunpack.c.l.b16 %v197
        %v230 = vunpack.c.l.b16 %v198
        %v231 = vunpack.c.l.b16 %v199
        %v232 = vunpack.c.l.b16 %v200
        %v233 = vunpack.c.l.b16 %v201
        %v234 = vpack.c.b16 %v227, %v226
        %v235 = vpack.c.b16 %v229, %v228
        %v236 = vpack.c.b16 %v231, %v230
        %v237 = vpack.c.b16 %v233, %v232
        %vm242 = vcmask 523264
        %v244 = vsel %vm242, %v217, 0
        %246 = vmatprep.subr.bf16.mxu0 0
        %247 = vmatpush1.bf16.msra.mxu0 0
        %248 = vmatprep.subr.bf16.mxu0 0
        %249 = vmatpush1.bf16.msra.mxu0 0
        %250 = vmatprep.subr.bf16.mxu0 0
        %251 = vmatpush1.bf16.msra.mxu0 0
        %252 = vmatprep.subr.bf16.mxu0 0
        %253 = vmatpush1.bf16.msra.mxu0 0
        %254 = vmatprep.subr.bf16.mxu0 0
        %255 = vmatpush1.bf16.msra.mxu0 %v237
        %256 = vmatprep.subr.bf16.mxu0 0
        %257 = vmatpush1.bf16.msra.mxu0 %v236
        %258 = vmatprep.subr.bf16.mxu0 0
        %259 = vmatpush1.bf16.msra.mxu0 %v235
        %260 = vmatprep.subr.bf16.mxu0 0
        %261 = vmatpush1.bf16.msra.mxu0 %v234
        %262 = vmatprep.subr.bf16.mxu0 0
        %263 = vmatpush2.bf16.msra.mxu0 0
        %264 = vmatprep.subr.bf16.mxu0 0
        %265 = vmatpush2.bf16.msra.mxu0 0
        %266 = vmatprep.subr.bf16.mxu0 0
        %267 = vmatpush2.bf16.msra.mxu0 0
        %268 = vmatprep.subr.bf16.mxu0 0
        %269 = vmatpush2.bf16.msra.mxu0 0
        %270 = vmatprep.subr.bf16.mxu0 0
        %271 = vmatpush2.bf16.msra.mxu0 0
        %272 = vmatprep.subr.bf16.mxu0 0
        %273 = vmatpush2.bf16.msra.mxu0 0
        %274 = vmatprep.subr.bf16.mxu0 0
        %275 = vmatpush2.bf16.msra.mxu0 0
        %276 = vmatprep.subr.bf16.mxu0 0
        %277 = vmatpush2.bf16.msra.mxu0 0
        %278 = vmatprep.mubr.bf16.mxu0 0
        %279 = vmatmul.mubr.bf16.gmra.mxu0 %v244
        %v280 = vpop.f32.mrf.mxu0
        %v281 = vadd.f32 0.0, %v280
        %v282 = vpop.f32.mrf.mxu0
        %v283 = vpop.f32.mrf.mxu0
        %v284 = vpop.f32.mrf.mxu0
        %285 = vdwg.mxu0
        %v294 = vunpack.c.l.b16 %v185
        %v295 = vunpack.c.l.b16 %v186
        %v296 = vunpack.c.l.b16 %v187
        %v297 = vunpack.c.l.b16 %v188
        %v298 = vunpack.c.l.b16 %v189
        %v299 = vunpack.c.l.b16 %v190
        %v300 = vunpack.c.l.b16 %v191
        %v301 = vunpack.c.l.b16 %v192
        %v302 = vpack.c.b16 %v295, %v294
        %v303 = vpack.c.b16 %v297, %v296
        %v304 = vpack.c.b16 %v299, %v298
        %v305 = vpack.c.b16 %v301, %v300
        %310 = vmatprep.subr.bf16.mxu0 0
        %311 = vmatpush1.bf16.msra.mxu0 0
        %312 = vmatprep.subr.bf16.mxu0 0
        %313 = vmatpush1.bf16.msra.mxu0 0
        %314 = vmatprep.subr.bf16.mxu0 0
        %315 = vmatpush1.bf16.msra.mxu0 0
        %316 = vmatprep.subr.bf16.mxu0 0
        %317 = vmatpush1.bf16.msra.mxu0 0
        %318 = vmatprep.subr.bf16.mxu0 0
        %319 = vmatpush1.bf16.msra.mxu0 %v305
        %320 = vmatprep.subr.bf16.mxu0 0
        %321 = vmatpush1.bf16.msra.mxu0 %v304
        %322 = vmatprep.subr.bf16.mxu0 0
        %323 = vmatpush1.bf16.msra.mxu0 %v303
        %324 = vmatprep.subr.bf16.mxu0 0
        %325 = vmatpush1.bf16.msra.mxu0 %v302
        %326 = vmatprep.subr.bf16.mxu0 0
        %327 = vmatpush2.bf16.msra.mxu0 0
        %328 = vmatprep.subr.bf16.mxu0 0
        %329 = vmatpush2.bf16.msra.mxu0 0
        %330 = vmatprep.subr.bf16.mxu0 0
        %331 = vmatpush2.bf16.msra.mxu0 0
        %332 = vmatprep.subr.bf16.mxu0 0
        %333 = vmatpush2.bf16.msra.mxu0 0
        %334 = vmatprep.subr.bf16.mxu0 0
        %335 = vmatpush2.bf16.msra.mxu0 0
        %336 = vmatprep.subr.bf16.mxu0 0
        %337 = vmatpush2.bf16.msra.mxu0 0
        %338 = vmatprep.subr.bf16.mxu0 0
        %339 = vmatpush2.bf16.msra.mxu0 0
        %340 = vmatprep.subr.bf16.mxu0 0
        %341 = vmatpush2.bf16.msra.mxu0 0
        %342 = vmatprep.mubr.bf16.mxu0 0
        %343 = vmatmul.mubr.bf16.gmra.mxu0 %v244
        %v344 = vpop.f32.mrf.mxu0
        %v345 = vadd.f32 %v281, %v344
        %v346 = vpop.f32.mrf.mxu0
        %v347 = vpop.f32.mrf.mxu0
        %v348 = vpop.f32.mrf.mxu0
        %349 = vdwg.mxu0
        %v358 = vunpack.c.l.b16 %v203
        %v359 = vunpack.c.l.b16 %v204
        %v360 = vunpack.c.l.b16 %v205
        %v361 = vunpack.c.l.b16 %v206
        %v362 = vunpack.c.l.b16 %v207
        %v363 = vunpack.c.l.b16 %v208
        %v364 = vunpack.c.l.b16 %v209
        %v365 = vunpack.c.l.b16 %v210
        %v366 = vpack.c.b16 %v359, %v358
        %v367 = vpack.c.b16 %v361, %v360
        %v368 = vpack.c.b16 %v363, %v362
        %v369 = vpack.c.b16 %v365, %v364
        %374 = vmatprep.subr.bf16.mxu0 0
        %375 = vmatpush1.bf16.msra.mxu0 0
        %376 = vmatprep.subr.bf16.mxu0 0
        %377 = vmatpush1.bf16.msra.mxu0 0
        %378 = vmatprep.subr.bf16.mxu0 0
        %379 = vmatpush1.bf16.msra.mxu0 0
        %380 = vmatprep.subr.bf16.mxu0 0
        %381 = vmatpush1.bf16.msra.mxu0 0
        %382 = vmatprep.subr.bf16.mxu0 0
        %383 = vmatpush1.bf16.msra.mxu0 %v369
        %384 = vmatprep.subr.bf16.mxu0 0
        %385 = vmatpush1.bf16.msra.mxu0 %v368
        %386 = vmatprep.subr.bf16.mxu0 0
        %387 = vmatpush1.bf16.msra.mxu0 %v367
        %388 = vmatprep.subr.bf16.mxu0 0
        %389 = vmatpush1.bf16.msra.mxu0 %v366
        %390 = vmatprep.subr.bf16.mxu0 0
        %391 = vmatpush2.bf16.msra.mxu0 0
        %392 = vmatprep.subr.bf16.mxu0 0
        %393 = vmatpush2.bf16.msra.mxu0 0
        %394 = vmatprep.subr.bf16.mxu0 0
        %395 = vmatpush2.bf16.msra.mxu0 0
        %396 = vmatprep.subr.bf16.mxu0 0
        %397 = vmatpush2.bf16.msra.mxu0 0
        %398 = vmatprep.subr.bf16.mxu0 0
        %399 = vmatpush2.bf16.msra.mxu0 0
        %400 = vmatprep.subr.bf16.mxu0 0
        %401 = vmatpush2.bf16.msra.mxu0 0
        %402 = vmatprep.subr.bf16.mxu0 0
        %403 = vmatpush2.bf16.msra.mxu0 0
        %404 = vmatprep.subr.bf16.mxu0 0
        %405 = vmatpush2.bf16.msra.mxu0 0
        %406 = vmatprep.mubr.bf16.mxu0 0
        %407 = vmatmul.mubr.bf16.gmra.mxu0 %v244
        %v408 = vpop.f32.mrf.mxu0
        %v409 = vadd.f32 0.0, %v408
        %v410 = vpop.f32.mrf.mxu0
        %v411 = vpop.f32.mrf.mxu0
        %v412 = vpop.f32.mrf.mxu0
        %413 = vdwg.mxu0
        %v414 = vadd.f32 %v345, %v409
        %v415 = vld [vmem:[#allocation2] sm:$0xff]
        %v416 = vadd.f32 %v415, %v414
        %vm417 = vcmask 261120
        %418 = vst.msk [vmem:[#allocation2] sm:$0xff] %vm417, %v416
        %419 = vset.pattern.permute.xlu0 1
        %420 = vperm.xlu0 %419, %v179
        %v421 = vpop.permute.xlu0 %420
        %vm422 = vcmp.eq.s32.totalorder %v421, %v184
        %v423 = vsel %vm422, 1, 0
        %v424 = vcvt.s32.f32 %v423
        %v425 = vpack.c.bf16 %v424, %v424
        %v427 = vsel %vm242, %v425, 0
        %429 = vmatprep.subr.bf16.mxu0 0
        %430 = vmatpush1.bf16.msra.mxu0 0
        %431 = vmatprep.subr.bf16.mxu0 0
        %432 = vmatpush1.bf16.msra.mxu0 0
        %433 = vmatprep.subr.bf16.mxu0 0
        %434 = vmatpush1.bf16.msra.mxu0 0
        %435 = vmatprep.subr.bf16.mxu0 0
        %436 = vmatpush1.bf16.msra.mxu0 0
        %437 = vmatprep.subr.bf16.mxu0 0
        %438 = vmatpush1.bf16.msra.mxu0 %v237
        %439 = vmatprep.subr.bf16.mxu0 0
        %440 = vmatpush1.bf16.msra.mxu0 %v236
        %441 = vmatprep.subr.bf16.mxu0 0
        %442 = vmatpush1.bf16.msra.mxu0 %v235
        %443 = vmatprep.subr.bf16.mxu0 0
        %444 = vmatpush1.bf16.msra.mxu0 %v234
        %445 = vmatprep.subr.bf16.mxu0 0
        %446 = vmatpush2.bf16.msra.mxu0 0
        %447 = vmatprep.subr.bf16.mxu0 0
        %448 = vmatpush2.bf16.msra.mxu0 0
        %449 = vmatprep.subr.bf16.mxu0 0
        %450 = vmatpush2.bf16.msra.mxu0 0
        %451 = vmatprep.subr.bf16.mxu0 0
        %452 = vmatpush2.bf16.msra.mxu0 0
        %453 = vmatprep.subr.bf16.mxu0 0
        %454 = vmatpush2.bf16.msra.mxu0 0
        %455 = vmatprep.subr.bf16.mxu0 0
        %456 = vmatpush2.bf16.msra.mxu0 0
        %457 = vmatprep.subr.bf16.mxu0 0
        %458 = vmatpush2.bf16.msra.mxu0 0
        %459 = vmatprep.subr.bf16.mxu0 0
        %460 = vmatpush2.bf16.msra.mxu0 0
        %461 = vmatprep.mubr.bf16.mxu0 0
        %462 = vmatmul.mubr.bf16.gmra.mxu0 %v427
        %v463 = vpop.f32.mrf.mxu0
        %v464 = vadd.f32 0.0, %v463
        %v465 = vpop.f32.mrf.mxu0
        %v466 = vpop.f32.mrf.mxu0
        %v467 = vpop.f32.mrf.mxu0
        %468 = vdwg.mxu0
        %469 = vmatprep.subr.bf16.mxu0 0
        %470 = vmatpush1.bf16.msra.mxu0 0
        %471 = vmatprep.subr.bf16.mxu0 0
        %472 = vmatpush1.bf16.msra.mxu0 0
        %473 = vmatprep.subr.bf16.mxu0 0
        %474 = vmatpush1.bf16.msra.mxu0 0
        %475 = vmatprep.subr.bf16.mxu0 0
        %476 = vmatpush1.bf16.msra.mxu0 0
        %477 = vmatprep.subr.bf16.mxu0 0
        %478 = vmatpush1.bf16.msra.mxu0 %v305
        %479 = vmatprep.subr.bf16.mxu0 0
        %480 = vmatpush1.bf16.msra.mxu0 %v304
        %481 = vmatprep.subr.bf16.mxu0 0
        %482 = vmatpush1.bf16.msra.mxu0 %v303
        %483 = vmatprep.subr.bf16.mxu0 0
        %484 = vmatpush1.bf16.msra.mxu0 %v302
        %485 = vmatprep.subr.bf16.mxu0 0
        %486 = vmatpush2.bf16.msra.mxu0 0
        %487 = vmatprep.subr.bf16.mxu0 0
        %488 = vmatpush2.bf16.msra.mxu0 0
        %489 = vmatprep.subr.bf16.mxu0 0
        %490 = vmatpush2.bf16.msra.mxu0 0
        %491 = vmatprep.subr.bf16.mxu0 0
        %492 = vmatpush2.bf16.msra.mxu0 0
        %493 = vmatprep.subr.bf16.mxu0 0
        %494 = vmatpush2.bf16.msra.mxu0 0
        %495 = vmatprep.subr.bf16.mxu0 0
        %496 = vmatpush2.bf16.msra.mxu0 0
        %497 = vmatprep.subr.bf16.mxu0 0
        %498 = vmatpush2.bf16.msra.mxu0 0
        %499 = vmatprep.subr.bf16.mxu0 0
        %500 = vmatpush2.bf16.msra.mxu0 0
        %501 = vmatprep.mubr.bf16.mxu0 0
        %502 = vmatmul.mubr.bf16.gmra.mxu0 %v427
        %v503 = vpop.f32.mrf.mxu0
        %v504 = vadd.f32 %v464, %v503
        %v505 = vpop.f32.mrf.mxu0
        %v506 = vpop.f32.mrf.mxu0
        %v507 = vpop.f32.mrf.mxu0
        %508 = vdwg.mxu0
        %509 = vmatprep.subr.bf16.mxu0 0
        %510 = vmatpush1.bf16.msra.mxu0 0
        %511 = vmatprep.subr.bf16.mxu0 0
        %512 = vmatpush1.bf16.msra.mxu0 0
        %513 = vmatprep.subr.bf16.mxu0 0
        %514 = vmatpush1.bf16.msra.mxu0 0
        %515 = vmatprep.subr.bf16.mxu0 0
        %516 = vmatpush1.bf16.msra.mxu0 0
        %517 = vmatprep.subr.bf16.mxu0 0
        %518 = vmatpush1.bf16.msra.mxu0 %v369
        %519 = vmatprep.subr.bf16.mxu0 0
        %520 = vmatpush1.bf16.msra.mxu0 %v368
        %521 = vmatprep.subr.bf16.mxu0 0
        %522 = vmatpush1.bf16.msra.mxu0 %v367
        %523 = vmatprep.subr.bf16.mxu0 0
        %524 = vmatpush1.bf16.msra.mxu0 %v366
        %525 = vmatprep.subr.bf16.mxu0 0
        %526 = vmatpush2.bf16.msra.mxu0 0
        %527 = vmatprep.subr.bf16.mxu0 0
        %528 = vmatpush2.bf16.msra.mxu0 0
        %529 = vmatprep.subr.bf16.mxu0 0
        %530 = vmatpush2.bf16.msra.mxu0 0
        %531 = vmatprep.subr.bf16.mxu0 0
        %532 = vmatpush2.bf16.msra.mxu0 0
        %533 = vmatprep.subr.bf16.mxu0 0
        %534 = vmatpush2.bf16.msra.mxu0 0
        %535 = vmatprep.subr.bf16.mxu0 0
        %536 = vmatpush2.bf16.msra.mxu0 0
        %537 = vmatprep.subr.bf16.mxu0 0
        %538 = vmatpush2.bf16.msra.mxu0 0
        %539 = vmatprep.subr.bf16.mxu0 0
        %540 = vmatpush2.bf16.msra.mxu0 0
        %541 = vmatprep.mubr.bf16.mxu0 0
        %542 = vmatmul.mubr.bf16.gmra.mxu0 %v427
        %v543 = vpop.f32.mrf.mxu0
        %v544 = vadd.f32 0.0, %v543
        %v545 = vpop.f32.mrf.mxu0
        %v546 = vpop.f32.mrf.mxu0
        %v547 = vpop.f32.mrf.mxu0
        %548 = vdwg.mxu0
        %v549 = vadd.f32 %v504, %v544
        %v550 = vld [vmem:[#allocation2] sm:$0xff]
        %552 = vrot.lane.b32.xlu0 %v549, 32
        %v553 = vpop.permute.xlu0 %552
        %v555 = vadd.f32 %v550, %v553
        %vm556 = vcmask 523520
        %557 = vst.msk [vmem:[#allocation2] sm:$0xff] %vm556, %v555
        %558 = vset.pattern.permute.xlu0 2
        %559 = vperm.xlu0 %558, %v179
        %v560 = vpop.permute.xlu0 %559
        %vm561 = vcmp.eq.s32.totalorder %v560, %v184
        %v562 = vsel %vm561, 1, 0
        %v563 = vcvt.s32.f32 %v562
        %v564 = vpack.c.bf16 %v563, %v563
        %v566 = vsel %vm242, %v564, 0
        %568 = vmatprep.subr.bf16.mxu0 0
        %569 = vmatpush1.bf16.msra.mxu0 0
        %570 = vmatprep.subr.bf16.mxu0 0
        %571 = vmatpush1.bf16.msra.mxu0 0
        %572 = vmatprep.subr.bf16.mxu0 0
        %573 = vmatpush1.bf16.msra.mxu0 0
        %574 = vmatprep.subr.bf16.mxu0 0
        %575 = vmatpush1.bf16.msra.mxu0 0
        %576 = vmatprep.subr.bf16.mxu0 0
        %577 = vmatpush1.bf16.msra.mxu0 %v237
        %578 = vmatprep.subr.bf16.mxu0 0
        %579 = vmatpush1.bf16.msra.mxu0 %v236
        %580 = vmatprep.subr.bf16.mxu0 0
        %581 = vmatpush1.bf16.msra.mxu0 %v235
        %582 = vmatprep.subr.bf16.mxu0 0
        %583 = vmatpush1.bf16.msra.mxu0 %v234
        %584 = vmatprep.subr.bf16.mxu0 0
        %585 = vmatpush2.bf16.msra.mxu0 0
        %586 = vmatprep.subr.bf16.mxu0 0
        %587 = vmatpush2.bf16.msra.mxu0 0
        %588 = vmatprep.subr.bf16.mxu0 0
        %589 = vmatpush2.bf16.msra.mxu0 0
        %590 = vmatprep.subr.bf16.mxu0 0
        %591 = vmatpush2.bf16.msra.mxu0 0
        %592 = vmatprep.subr.bf16.mxu0 0
        %593 = vmatpush2.bf16.msra.mxu0 0
        %594 = vmatprep.subr.bf16.mxu0 0
        %595 = vmatpush2.bf16.msra.mxu0 0
        %596 = vmatprep.subr.bf16.mxu0 0
        %597 = vmatpush2.bf16.msra.mxu0 0
        %598 = vmatprep.subr.bf16.mxu0 0
        %599 = vmatpush2.bf16.msra.mxu0 0
        %600 = vmatprep.mubr.bf16.mxu0 0
        %601 = vmatmul.mubr.bf16.gmra.mxu0 %v566
        %v602 = vpop.f32.mrf.mxu0
        %v603 = vadd.f32 0.0, %v602
        %v604 = vpop.f32.mrf.mxu0
        %v605 = vpop.f32.mrf.mxu0
        %v606 = vpop.f32.mrf.mxu0
        %607 = vdwg.mxu0
        %608 = vmatprep.subr.bf16.mxu0 0
        %609 = vmatpush1.bf16.msra.mxu0 0
        %610 = vmatprep.subr.bf16.mxu0 0
        %611 = vmatpush1.bf16.msra.mxu0 0
        %612 = vmatprep.subr.bf16.mxu0 0
        %613 = vmatpush1.bf16.msra.mxu0 0
        %614 = vmatprep.subr.bf16.mxu0 0
        %615 = vmatpush1.bf16.msra.mxu0 0
        %616 = vmatprep.subr.bf16.mxu0 0
        %617 = vmatpush1.bf16.msra.mxu0 %v305
        %618 = vmatprep.subr.bf16.mxu0 0
        %619 = vmatpush1.bf16.msra.mxu0 %v304
        %620 = vmatprep.subr.bf16.mxu0 0
        %621 = vmatpush1.bf16.msra.mxu0 %v303
        %622 = vmatprep.subr.bf16.mxu0 0
        %623 = vmatpush1.bf16.msra.mxu0 %v302
        %624 = vmatprep.subr.bf16.mxu0 0
        %625 = vmatpush2.bf16.msra.mxu0 0
        %626 = vmatprep.subr.bf16.mxu0 0
        %627 = vmatpush2.bf16.msra.mxu0 0
        %628 = vmatprep.subr.bf16.mxu0 0
        %629 = vmatpush2.bf16.msra.mxu0 0
        %630 = vmatprep.subr.bf16.mxu0 0
        %631 = vmatpush2.bf16.msra.mxu0 0
        %632 = vmatprep.subr.bf16.mxu0 0
        %633 = vmatpush2.bf16.msra.mxu0 0
        %634 = vmatprep.subr.bf16.mxu0 0
        %635 = vmatpush2.bf16.msra.mxu0 0
        %636 = vmatprep.subr.bf16.mxu0 0
        %637 = vmatpush2.bf16.msra.mxu0 0
        %638 = vmatprep.subr.bf16.mxu0 0
        %639 = vmatpush2.bf16.msra.mxu0 0
        %640 = vmatprep.mubr.bf16.mxu0 0
        %641 = vmatmul.mubr.bf16.gmra.mxu0 %v566
        %v642 = vpop.f32.mrf.mxu0
        %v643 = vadd.f32 %v603, %v642
        %v644 = vpop.f32.mrf.mxu0
        %v645 = vpop.f32.mrf.mxu0
        %v646 = vpop.f32.mrf.mxu0
        %647 = vdwg.mxu0
        %648 = vmatprep.subr.bf16.mxu0 0
        %649 = vmatpush1.bf16.msra.mxu0 0
        %650 = vmatprep.subr.bf16.mxu0 0
        %651 = vmatpush1.bf16.msra.mxu0 0
        %652 = vmatprep.subr.bf16.mxu0 0
        %653 = vmatpush1.bf16.msra.mxu0 0
        %654 = vmatprep.subr.bf16.mxu0 0
        %655 = vmatpush1.bf16.msra.mxu0 0
        %656 = vmatprep.subr.bf16.mxu0 0
        %657 = vmatpush1.bf16.msra.mxu0 %v369
        %658 = vmatprep.subr.bf16.mxu0 0
        %659 = vmatpush1.bf16.msra.mxu0 %v368
        %660 = vmatprep.subr.bf16.mxu0 0
        %661 = vmatpush1.bf16.msra.mxu0 %v367
        %662 = vmatprep.subr.bf16.mxu0 0
        %663 = vmatpush1.bf16.msra.mxu0 %v366
        %664 = vmatprep.subr.bf16.mxu0 0
        %665 = vmatpush2.bf16.msra.mxu0 0
        %666 = vmatprep.subr.bf16.mxu0 0
        %667 = vmatpush2.bf16.msra.mxu0 0
        %668 = vmatprep.subr.bf16.mxu0 0
        %669 = vmatpush2.bf16.msra.mxu0 0
        %670 = vmatprep.subr.bf16.mxu0 0
        %671 = vmatpush2.bf16.msra.mxu0 0
        %672 = vmatprep.subr.bf16.mxu0 0
        %673 = vmatpush2.bf16.msra.mxu0 0
        %674 = vmatprep.subr.bf16.mxu0 0
        %675 = vmatpush2.bf16.msra.mxu0 0
        %676 = vmatprep.subr.bf16.mxu0 0
        %677 = vmatpush2.bf16.msra.mxu0 0
        %678 = vmatprep.subr.bf16.mxu0 0
        %679 = vmatpush2.bf16.msra.mxu0 0
        %680 = vmatprep.mubr.bf16.mxu0 0
        %681 = vmatmul.mubr.bf16.gmra.mxu0 %v566
        %v682 = vpop.f32.mrf.mxu0
        %v683 = vadd.f32 0.0, %v682
        %v684 = vpop.f32.mrf.mxu0
        %v685 = vpop.f32.mrf.mxu0
        %v686 = vpop.f32.mrf.mxu0
        %687 = vdwg.mxu0
        %v688 = vadd.f32 %v643, %v683
        %v689 = vld [vmem:[#allocation2] sm:$0xff]
        %691 = vrot.lane.b32.xlu0 %v688, 64
        %v692 = vpop.permute.xlu0 %691
        %v694 = vadd.f32 %v689, %v692
        %vm695 = vcmask 785920
        %696 = vst.msk [vmem:[#allocation2] sm:$0xff] %vm695, %v694
        %697 = vset.pattern.permute.xlu0 3
        %698 = vperm.xlu0 %697, %v179
        %v699 = vpop.permute.xlu0 %698
        %vm700 = vcmp.eq.s32.totalorder %v699, %v184
        %v701 = vsel %vm700, 1, 0
        %v702 = vcvt.s32.f32 %v701
        %v703 = vpack.c.bf16 %v702, %v702
        %v705 = vsel %vm242, %v703, 0
        %707 = vmatprep.subr.bf16.mxu0 0
        %708 = vmatpush1.bf16.msra.mxu0 0
        %709 = vmatprep.subr.bf16.mxu0 0
        %710 = vmatpush1.bf16.msra.mxu0 0
        %711 = vmatprep.subr.bf16.mxu0 0
        %712 = vmatpush1.bf16.msra.mxu0 0
        %713 = vmatprep.subr.bf16.mxu0 0
        %714 = vmatpush1.bf16.msra.mxu0 0
        %715 = vmatprep.subr.bf16.mxu0 0
        %716 = vmatpush1.bf16.msra.mxu0 %v237
        %717 = vmatprep.subr.bf16.mxu0 0
        %718 = vmatpush1.bf16.msra.mxu0 %v236
        %719 = vmatprep.subr.bf16.mxu0 0
        %720 = vmatpush1.bf16.msra.mxu0 %v235
        %721 = vmatprep.subr.bf16.mxu0 0
        %722 = vmatpush1.bf16.msra.mxu0 %v234
        %723 = vmatprep.subr.bf16.mxu0 0
        %724 = vmatpush2.bf16.msra.mxu0 0
        %725 = vmatprep.subr.bf16.mxu0 0
        %726 = vmatpush2.bf16.msra.mxu0 0
        %727 = vmatprep.subr.bf16.mxu0 0
        %728 = vmatpush2.bf16.msra.mxu0 0
        %729 = vmatprep.subr.bf16.mxu0 0
        %730 = vmatpush2.bf16.msra.mxu0 0
        %731 = vmatprep.subr.bf16.mxu0 0
        %732 = vmatpush2.bf16.msra.mxu0 0
        %733 = vmatprep.subr.bf16.mxu0 0
        %734 = vmatpush2.bf16.msra.mxu0 0
        %735 = vmatprep.subr.bf16.mxu0 0
        %736 = vmatpush2.bf16.msra.mxu0 0
        %737 = vmatprep.subr.bf16.mxu0 0
        %738 = vmatpush2.bf16.msra.mxu0 0
        %739 = vmatprep.mubr.bf16.mxu0 0
        %740 = vmatmul.mubr.bf16.gmra.mxu0 %v705
        %v741 = vpop.f32.mrf.mxu0
        %v742 = vadd.f32 0.0, %v741
        %v743 = vpop.f32.mrf.mxu0
        %v744 = vpop.f32.mrf.mxu0
        %v745 = vpop.f32.mrf.mxu0
        %746 = vdwg.mxu0
        %747 = vmatprep.subr.bf16.mxu0 0
        %748 = vmatpush1.bf16.msra.mxu0 0
        %749 = vmatprep.subr.bf16.mxu0 0
        %750 = vmatpush1.bf16.msra.mxu0 0
        %751 = vmatprep.subr.bf16.mxu0 0
        %752 = vmatpush1.bf16.msra.mxu0 0
        %753 = vmatprep.subr.bf16.mxu0 0
        %754 = vmatpush1.bf16.msra.mxu0 0
        %755 = vmatprep.subr.bf16.mxu0 0
        %756 = vmatpush1.bf16.msra.mxu0 %v305
        %757 = vmatprep.subr.bf16.mxu0 0
        %758 = vmatpush1.bf16.msra.mxu0 %v304
        %759 = vmatprep.subr.bf16.mxu0 0
        %760 = vmatpush1.bf16.msra.mxu0 %v303
        %761 = vmatprep.subr.bf16.mxu0 0
        %762 = vmatpush1.bf16.msra.mxu0 %v302
        %763 = vmatprep.subr.bf16.mxu0 0
        %764 = vmatpush2.bf16.msra.mxu0 0
        %765 = vmatprep.subr.bf16.mxu0 0
        %766 = vmatpush2.bf16.msra.mxu0 0
        %767 = vmatprep.subr.bf16.mxu0 0
        %768 = vmatpush2.bf16.msra.mxu0 0
        %769 = vmatprep.subr.bf16.mxu0 0
        %770 = vmatpush2.bf16.msra.mxu0 0
        %771 = vmatprep.subr.bf16.mxu0 0
        %772 = vmatpush2.bf16.msra.mxu0 0
        %773 = vmatprep.subr.bf16.mxu0 0
        %774 = vmatpush2.bf16.msra.mxu0 0
        %775 = vmatprep.subr.bf16.mxu0 0
        %776 = vmatpush2.bf16.msra.mxu0 0
        %777 = vmatprep.subr.bf16.mxu0 0
        %778 = vmatpush2.bf16.msra.mxu0 0
        %779 = vmatprep.mubr.bf16.mxu0 0
        %780 = vmatmul.mubr.bf16.gmra.mxu0 %v705
        %v781 = vpop.f32.mrf.mxu0
        %v782 = vadd.f32 %v742, %v781
        %v783 = vpop.f32.mrf.mxu0
        %v784 = vpop.f32.mrf.mxu0
        %v785 = vpop.f32.mrf.mxu0
        %786 = vdwg.mxu0
        %787 = vmatprep.subr.bf16.mxu0 0
        %788 = vmatpush1.bf16.msra.mxu0 0
        %789 = vmatprep.subr.bf16.mxu0 0
        %790 = vmatpush1.bf16.msra.mxu0 0
        %791 = vmatprep.subr.bf16.mxu0 0
        %792 = vmatpush1.bf16.msra.mxu0 0
        %793 = vmatprep.subr.bf16.mxu0 0
        %794 = vmatpush1.bf16.msra.mxu0 0
        %795 = vmatprep.subr.bf16.mxu0 0
        %796 = vmatpush1.bf16.msra.mxu0 %v369
        %797 = vmatprep.subr.bf16.mxu0 0
        %798 = vmatpush1.bf16.msra.mxu0 %v368
        %799 = vmatprep.subr.bf16.mxu0 0
        %800 = vmatpush1.bf16.msra.mxu0 %v367
        %801 = vmatprep.subr.bf16.mxu0 0
        %802 = vmatpush1.bf16.msra.mxu0 %v366
        %803 = vmatprep.subr.bf16.mxu0 0
        %804 = vmatpush2.bf16.msra.mxu0 0
        %805 = vmatprep.subr.bf16.mxu0 0
        %806 = vmatpush2.bf16.msra.mxu0 0
        %807 = vmatprep.subr.bf16.mxu0 0
        %808 = vmatpush2.bf16.msra.mxu0 0
        %809 = vmatprep.subr.bf16.mxu0 0
        %810 = vmatpush2.bf16.msra.mxu0 0
        %811 = vmatprep.subr.bf16.mxu0 0
        %812 = vmatpush2.bf16.msra.mxu0 0
        %813 = vmatprep.subr.bf16.mxu0 0
        %814 = vmatpush2.bf16.msra.mxu0 0
        %815 = vmatprep.subr.bf16.mxu0 0
        %816 = vmatpush2.bf16.msra.mxu0 0
        %817 = vmatprep.subr.bf16.mxu0 0
        %818 = vmatpush2.bf16.msra.mxu0 0
        %819 = vmatprep.mubr.bf16.mxu0 0
        %820 = vmatmul.mubr.bf16.gmra.mxu0 %v705
        %v821 = vpop.f32.mrf.mxu0
        %v822 = vadd.f32 0.0, %v821
        %v823 = vpop.f32.mrf.mxu0
        %v824 = vpop.f32.mrf.mxu0
        %v825 = vpop.f32.mrf.mxu0
        %826 = vdwg.mxu0
        %v827 = vadd.f32 %v782, %v822
        %v828 = vld [vmem:[#allocation2] sm:$0xff]
        %830 = vrot.lane.b32.xlu0 %v827, 96
        %v831 = vpop.permute.xlu0 %830
        %v833 = vadd.f32 %v828, %v831
        %vm834 = vcmask 1048320
        %835 = vst.msk [vmem:[#allocation2] sm:$0xff] %vm834, %v833
        // Predicated region
        $region33: #{tpu_custom_call.1} parent=27 // pred_check
          %p836 = pneg %p174
        $region34: #{tpu_custom_call.1} parent=27 // pred_check_branch
          %838 = sbr.rel (%p836) target = $region36
        $region35: #{tpu_custom_call.1} parent=27 // pred_region
          %v839 = vld [vmem:[#allocation2] sm:$0xff]
          %840 = vst [vmem:[%s162] sm:$0xff] %v839
        $region36: #{tpu_custom_call.1} parent=27 // pred_fallthru
          _
        %s841 = sand.u32 %s88, 1
        %s842 = scalar_lea.sflag [#allocation4], %s841
        %s843 = sand.u32 %s88, 1
        %s844 = smul.addr %s843, 8
        %s845 = scalar_lea.vmem [#allocation3], %s844
        // Predicated region
        $region37: #{tpu_custom_call.1} parent=27 // pred_check
          %p846 = pneg %p98
        $region38: #{tpu_custom_call.1} parent=27 // pred_check_branch
          %848 = sbr.rel (%p846) target = $region40
        $region39: #{tpu_custom_call.1} parent=27 // pred_region
          %s850 = ssub.s32 128, 128
          %851 = vsyncadd %s842, %s850
          %s852 = smul.addr %s20, 128
          %s853 = scalar_lea.hbm %s2, %s852
          %s855 = sshll.u32 %s845, 4
          %s856 = int_to_ptr.vmem [resolvable:$true] %s855
          %858 = dma.vmem_to_hbm [thread:$0]  %s856, 128, %s853, %s842
        $region40: #{tpu_custom_call.1} parent=27 // pred_fallthru
          _
      $region28: #{tpu_custom_call.1} parent=5 // pred_fallthru
        _
      %p859 = scmp.le.s32.totalorder 2, %s11
      // Predicated region
      $region41: #{tpu_custom_call.1} parent=5 // pred_check
        %p860 = pneg %p859
      $region42: #{tpu_custom_call.1} parent=5 // pred_check_branch
        %862 = sbr.rel (%p860) target = $region44
      $region43: #{tpu_custom_call.1} parent=5 // pred_region
        %s863 = ssub.s32 %s11, 2
        // Predicated region
        $region45: #{tpu_custom_call.1} parent=43 // pred_check
          %p864 = pneg %p104
        $region46: #{tpu_custom_call.1} parent=43 // pred_check_branch
          %866 = sbr.rel (%p864) target = $region48
        $region47: #{tpu_custom_call.1} parent=43 // pred_region
          %s867 = sand.u32 %s89, 1
          %s868 = scalar_lea.sflag [#allocation4], %s867
          %s869 = sand.u32 %s89, 1
          %s870 = smul.addr %s869, 8
          %s871 = scalar_lea.vmem [#allocation3], %s870
          %872 = dma.done %s868, 128
        $region48: #{tpu_custom_call.1} parent=43 // pred_fallthru
          _
      $region44: #{tpu_custom_call.1} parent=5 // pred_fallthru
        _
    $region6: #{tpu_custom_call.1} parent=1 // loop_footer
      %s15 = sadd.s32 1, %s11
    $region7: #{tpu_custom_call.1} parent=1 // loop_footer_branch
      %10 = sbr.rel target = $region3
    $region8: #{tpu_custom_call.1} parent=1 // loop_exit
      _
    %873 = vsyncpa [#allocation4], 1
    %s874 = scalar_lea.sflag [#allocation4], 1
    %875 = vsyncpa %s874, 1

</llo_original>
